<compile_context>
chip_gen: v7x
topology: tpu7x:2x2x1
jax: 0.10.0
libtpu: 0.0.40
codegen_flags: <defaults>
</compile_context>

<pallas_src>
import functools

import jax
import jax.numpy as jnp
from jax.experimental import pallas as pl
from jax.experimental.pallas import tpu as pltpu


# ---------------------------------------------------------------------------
# Block-size selection helpers
# ---------------------------------------------------------------------------

def _sublane_tile(dtype):
    """Native sublane tile for the dtype: 8 (f32), 16 (bf16/f16), 32 (int8)."""
    itemsize = jnp.dtype(dtype).itemsize
    return 8 * max(1, 4 // itemsize)


def _largest_divisor_leq(n, cap):
    """Largest divisor of n that is <= cap (always >= 1)."""
    cap = max(1, min(int(cap), n))
    for d in range(cap, 0, -1):
        if n % d == 0:
            return d
    return 1


def _largest_aligned_divisor_leq(n, cap, align):
    """Largest divisor of n that is a multiple of `align` and <= cap.

    Assumes `align` divides n; falls back to `align`.
    """
    best = align
    d = align
    top = min(int(cap), n)
    while d <= top:
        if n % d == 0:
            best = d
        d += align
    return best


def _output_block_budget():
    """Target bytes for one output block.

    The kernel is pure HBM traffic, so blocks should be as big as the
    double-buffered VMEM comfortably allows: ~12 MiB on the 128-MiB-VMEM parts
    (v5e/v6e), ~6 MiB on v7x (64 MiB physical VMEM), and 8 MiB when the
    generation cannot be queried (inside both recommended ranges).
    """
    budget = 8 * 1024 * 1024
    try:
        vmem = int(getattr(pltpu.get_tpu_info(), "vmem_capacity_bytes", 0) or 0)
        if vmem >= 96 * 1024 * 1024:
            budget = 12 * 1024 * 1024        # v5e / v6e
        elif vmem > 0:
            budget = 6 * 1024 * 1024         # v7x-class (64 MiB physical VMEM)
    except Exception:
        pass
    return budget


def _choose_blocks(N, C, H, W, itemsize, sublane, budget, flag_coords):
    """Pick (Bg, Hb, RI, GI, coords).

    Bg     : flattened (N*C) channels per block.
    Hb     : input rows per block.
    RI     : in-kernel row replication factor (1 or 3).
    GI     : grid extent of the row-replication axis (1 or 3).
    coords : None, ("whole_batch", m, C) or
             ("sub_batch", blocks_per_batch, c1_block, c1_local).
    """
    G = N * C
    full_pg = 9 * H * W * itemsize    # one channel's (3H, 3W) output block
    band_pg = 3 * H * W * itemsize    # one channel's (H, 3W) output band

    if full_pg <= budget or H % sublane != 0:
        # Full (3H, 3W) block per channel; all replication in-kernel.  Also the
        # graceful fallback when H is not sublane-aligned but over budget
        # (vmem_limit scales with the block instead of failing).
        RI, GI, Hb, per_g = 3, 1, H, full_pg
    else:
        # Row replication on the grid; full-width (H, 3W) bands per channel.
        RI, GI, Hb, per_g = 1, 3, H, band_pg

    coords = None
    if not flag_coords:
        Bg = _largest_divisor_leq(G, max(1, budget // per_g))
    else:
        per_batch = C * per_g
        if per_batch <= budget:
            # Whole batches per block: coordinate channels sit at static local
            # offsets k*C and k*C+1 (m capped to keep the unrolled trace small).
            m = _largest_divisor_leq(N, max(1, min(budget // per_batch, 8)))
            Bg = m * C
            coords = ("whole_batch", m, C)
        else:
            Bg = _largest_divisor_leq(C, max(1, budget // per_g))
            if Bg == C:
                coords = ("whole_batch", 1, C)
            else:
                coords = ("sub_batch", C // Bg, 1 // Bg, 1 % Bg)

    # Megacore (v7x has 2 TensorCores): ensure >= 2 grid steps when possible.
    if GI == 1 and G // Bg == 1 and G >= 2:
        if not flag_coords:
            Bg = _largest_divisor_leq(G, max(1, G // 2))
        elif N >= 2:
            m = _largest_divisor_leq(N, max(1, min(N // 2, 8)))
            Bg = m * C
            coords = ("whole_batch", m, C)
        else:
            Bg = _largest_divisor_leq(C, max(1, C // 2))
            if Bg == C:
                coords = ("whole_batch", 1, C)
            else:
                coords = ("sub_batch", C // Bg, 1 // Bg, 1 % Bg)

    # H-tiling fallback: even a single (H, 3W) band is over budget.
    if RI == 1 and Bg == 1 and band_pg > budget:
        cap_rows = max(sublane, budget // (3 * W * itemsize))
        Hb = _largest_aligned_divisor_leq(H, cap_rows, sublane)

    return Bg, Hb, RI, GI, coords


# ---------------------------------------------------------------------------
# Kernel
# ---------------------------------------------------------------------------

def _periodic_pad_kernel(x_ref, o_ref, *, Hb, W, RI, coords):
    """x_ref: (Bg, Hb, W) input slab.  o_ref: (Bg, RI*Hb, 3W) output block."""
    gi = pl.program_id(2)                       # row-replication grid index

    if coords is not None and coords[0] == "sub_batch":
        blocks_per_batch = coords[1]
        c1_block, c1_local = coords[2], coords[3]
        in_batch = pl.program_id(0) % blocks_per_batch

    for ii in range(RI):
        rows = slice(ii * Hb, (ii + 1) * Hb)
        row_tile = gi * RI + ii                 # which of the 3 row images
        for jj in range(3):
            cols = slice(jj * W, (jj + 1) * W)
            col_off = jj - 1                    # Python int (weak-typed add)

            # Per-store load keeps vreg pressure flat (streamed vld/vst).
            o_ref[:, rows, cols] = x_ref[...]

            if coords is None:
                continue

            row_off = (row_tile - 1).astype(o_ref.dtype)

            if coords[0] == "whole_batch":
                _, m, C = coords
                for k in range(m):
                    cx = k * C                  # x-coordinate channel
                    cy = k * C + 1              # y-coordinate channel
                    o_ref[cx, rows, cols] = x_ref[cx] + col_off
                    o_ref[cy, rows, cols] = x_ref[cy] + row_off
            else:
                @pl.when(in_batch == 0)
                def _():
                    o_ref[0, rows, cols] = x_ref[0] + col_off

                @pl.when(in_batch == c1_block)
                def _():
                    o_ref[c1_local, rows, cols] = x_ref[c1_local] + row_off


# ---------------------------------------------------------------------------
# Wrapper
# ---------------------------------------------------------------------------

def periodic_pad_2d(x, flag_coords=False, *, out_block_budget=None):
    """JAX/Pallas equivalent of PeriodicPad2d.forward (forward pass only)."""
    nd = x.ndim
    if nd not in (2, 4):
        raise ValueError(
            "Expects a tensor of rank 2 ([nx, ny]) or 4 ([nb, nc, nx, ny]); "
            f"got rank {nd}."
        )
    squeeze = nd == 2
    if squeeze:
        x = x[None, None]                       # -> [1, 1, H, W]
    N, C, H, W = x.shape
    if flag_coords and C < 2:
        raise ValueError("flag_coords=True needs at least 2 channels (x, y).")

    itemsize = jnp.dtype(x.dtype).itemsize
    sublane = _sublane_tile(x.dtype)
    budget = int(out_block_budget) if out_block_budget else _output_block_budget()

    Bg, Hb, RI, GI, coords = _choose_blocks(
        N, C, H, W, itemsize, sublane, budget, flag_coords)

    G = N * C
    n_hblocks = H // Hb                         # input row-blocks per channel

    kernel = functools.partial(
        _periodic_pad_kernel, Hb=Hb, W=W, RI=RI, coords=coords)

    # VMEM limit tied to the actual (double-buffered) block footprint.
    in_bytes = Bg * Hb * W * itemsize
    out_bytes = Bg * (RI * Hb) * (3 * W) * itemsize
    need = 2 * (in_bytes + out_bytes)
    vmem_limit = int(min(max(need + need // 4, 32 * 1024 * 1024),
                         100 * 1024 * 1024))

    out_flat = pl.pallas_call(
        kernel,
        out_shape=jax.ShapeDtypeStruct((G, 3 * H, 3 * W), x.dtype),
        grid=(G // Bg, n_hblocks, GI),
        in_specs=[
            # Constant across the innermost (gi) axis -> each (Bg, Hb, W) slab
            # is DMA'd from HBM exactly once and fans out to up to 3 output
            # blocks (the op's 9:1 write:read lower bound).
            pl.BlockSpec((Bg, Hb, W), lambda g, hi, gi: (g, hi, 0)),
        ],
        out_specs=pl.BlockSpec(
            (Bg, RI * Hb, 3 * W),
            lambda g, hi, gi: (g, gi * n_hblocks + hi, 0),
        ),
        compiler_params=pltpu.CompilerParams(
            # Every grid point writes a disjoint output block -> all parallel
            # (lets v7x's two TensorCores split the grid).
            dimension_semantics=("parallel", "parallel", "parallel"),
            vmem_limit_bytes=vmem_limit,
        ),
    )(x.reshape(G, H, W))

    out = out_flat.reshape(N, C, 3 * H, 3 * W)
    if squeeze:
        out = out[0, 0]
    return out


# ---------------------------------------------------------------------------
# Pure-JAX reference and self-test
# ---------------------------------------------------------------------------

def _reference(x, flag_coords=False):
    """Pure-JAX reference mirroring the PyTorch forward, for verification."""
    nd = x.ndim
    squeeze = nd == 2
    if squeeze:
        x = x[None, None]
    out = jnp.tile(x, (1, 1, 3, 3))
    if flag_coords:
        _, _, H3, W3 = out.shape
        H, W = H3 // 3, W3 // 3
        col_off = (jnp.arange(W3) // W - 1).astype(out.dtype)   # (3W,)
        row_off = (jnp.arange(H3) // H - 1).astype(out.dtype)   # (3H,)
        out = out.at[:, 0, :, :].add(col_off[None, None, :])
        out = out.at[:, 1, :, :].add(row_off[None, :, None])
    if squeeze:
        out = out[0, 0]
    return out


if __name__ == "__main__":
    key = jax.random.PRNGKey(0)

    # Primary config: [N=2, C=4, H=16, W=16].
    x = jax.random.normal(key, (2, 4, 16, 16), dtype=jnp.float32)

    y = jax.block_until_ready(periodic_pad_2d(x, flag_coords=False))
    assert y.shape == (2, 4, 48, 48), y.shape
    assert jnp.allclose(y, _reference(x, flag_coords=False)), "mismatch (flag_coords=False)"

    y2 = jax.block_until_ready(periodic_pad_2d(x, flag_coords=True))
    assert jnp.allclose(y2, _reference(x, flag_coords=True)), "mismatch (flag_coords=True)"

    # 2-D input path.
    x2d = jax.random.normal(jax.random.PRNGKey(1), (16, 16), dtype=jnp.float32)
    z = jax.block_until_ready(periodic_pad_2d(x2d))
    assert z.shape == (48, 48)
    assert jnp.allclose(z, jnp.tile(x2d, (3, 3))), "mismatch (2-D path)"

    # Lane-aligned shape; coords offsets gated per channel block (sub-batch path).
    x3 = jax.random.normal(jax.random.PRNGKey(2), (1, 3, 8, 128), dtype=jnp.float32)
    y3 = jax.block_until_ready(periodic_pad_2d(x3, flag_coords=True))
    assert y3.shape == (1, 3, 24, 384), y3.shape
    assert jnp.allclose(y3, _reference(x3, flag_coords=True)), "mismatch (aligned, coords)"

    # bf16: dtype-aware sublane tiling, exact copy.
    x4 = jax.random.normal(jax.random.PRNGKey(3), (1, 2, 32, 128), dtype=jnp.bfloat16)
    y4 = jax.block_until_ready(periodic_pad_2d(x4, flag_coords=False))
    assert jnp.array_equal(y4, _reference(x4, flag_coords=False)), "mismatch (bf16)"

    # Force the grid-replicated (RI=1) and H-tiled fallback paths with a tiny
    # artificial block budget (real budgets only hit them on large tensors).
    y5 = jax.block_until_ready(
        periodic_pad_2d(x, flag_coords=False, out_block_budget=4 * 1024))
    assert jnp.allclose(y5, _reference(x, flag_coords=False)), "mismatch (RI=1 path)"

    y6 = jax.block_until_ready(
        periodic_pad_2d(x, flag_coords=True, out_block_budget=1024))
    assert jnp.allclose(y6, _reference(x, flag_coords=True)), "mismatch (H-tiled coords path)"

    print("KERNEL_OK")
</pallas_src>

<mosaic_0001>
module attributes {stable_mosaic.version = 11 : i64} {
  func.func @_periodic_pad_kernel(%arg0: i32, %arg1: i32, %arg2: i32, %arg3: memref<4x16x16xf32, #tpu.memory_space<vmem>>, %arg4: memref<4x48x48xf32, #tpu.memory_space<vmem>>) attributes {dimension_semantics = [#tpu.dimension_semantics<parallel>, #tpu.dimension_semantics<parallel>, #tpu.dimension_semantics<parallel>], iteration_bounds = array<i64: 2, 1, 1>, scalar_prefetch = 0 : i64, scratch_operands = 0 : i64, tpu.core_type = #tpu.core_type<tc>, window_params = [{transform_indices = @transform_0, window_bounds = array<i64: 4, 16, 16>}, {transform_indices = @transform_1, window_bounds = array<i64: 4, 48, 48>}]} {
    %c0 = arith.constant 0 : index
    %c0_0 = arith.constant 0 : index
    %c0_1 = arith.constant 0 : index
    %0 = vector.load %arg3[%c0, %c0_0, %c0_1] : memref<4x16x16xf32, #tpu.memory_space<vmem>>, vector<4x16x16xf32>
    %c0_2 = arith.constant 0 : index
    %c0_3 = arith.constant 0 : index
    %c0_4 = arith.constant 0 : index
    %1 = vector.load %arg4[%c0_2, %c0_3, %c0_4] : memref<4x48x48xf32, #tpu.memory_space<vmem>>, vector<4x16x16xf32>
    tpu.vector_store %arg4[%c0_2, %c0_3, %c0_4], %0 {strides = array<i32>} : memref<4x48x48xf32, #tpu.memory_space<vmem>>, vector<4x16x16xf32>,
    %c0_5 = arith.constant 0 : index
    %c0_6 = arith.constant 0 : index
    %c0_7 = arith.constant 0 : index
    %2 = vector.load %arg3[%c0_5, %c0_6, %c0_7] : memref<4x16x16xf32, #tpu.memory_space<vmem>>, vector<4x16x16xf32>
    %c0_8 = arith.constant 0 : index
    %c0_9 = arith.constant 0 : index
    %c16 = arith.constant 16 : index
    %3 = vector.load %arg4[%c0_8, %c0_9, %c16] : memref<4x48x48xf32, #tpu.memory_space<vmem>>, vector<4x16x16xf32>
    tpu.vector_store %arg4[%c0_8, %c0_9, %c16], %2 {strides = array<i32>} : memref<4x48x48xf32, #tpu.memory_space<vmem>>, vector<4x16x16xf32>,
    %c0_10 = arith.constant 0 : index
    %c0_11 = arith.constant 0 : index
    %c0_12 = arith.constant 0 : index
    %4 = vector.load %arg3[%c0_10, %c0_11, %c0_12] : memref<4x16x16xf32, #tpu.memory_space<vmem>>, vector<4x16x16xf32>
    %c0_13 = arith.constant 0 : index
    %c0_14 = arith.constant 0 : index
    %c32 = arith.constant 32 : index
    %5 = vector.load %arg4[%c0_13, %c0_14, %c32] : memref<4x48x48xf32, #tpu.memory_space<vmem>>, vector<4x16x16xf32>
    tpu.vector_store %arg4[%c0_13, %c0_14, %c32], %4 {strides = array<i32>} : memref<4x48x48xf32, #tpu.memory_space<vmem>>, vector<4x16x16xf32>,
    %c0_15 = arith.constant 0 : index
    %c0_16 = arith.constant 0 : index
    %c0_17 = arith.constant 0 : index
    %6 = vector.load %arg3[%c0_15, %c0_16, %c0_17] : memref<4x16x16xf32, #tpu.memory_space<vmem>>, vector<4x16x16xf32>
    %c0_18 = arith.constant 0 : index
    %c16_19 = arith.constant 16 : index
    %c0_20 = arith.constant 0 : index
    %7 = vector.load %arg4[%c0_18, %c16_19, %c0_20] : memref<4x48x48xf32, #tpu.memory_space<vmem>>, vector<4x16x16xf32>
    tpu.vector_store %arg4[%c0_18, %c16_19, %c0_20], %6 {strides = array<i32>} : memref<4x48x48xf32, #tpu.memory_space<vmem>>, vector<4x16x16xf32>,
    %c0_21 = arith.constant 0 : index
    %c0_22 = arith.constant 0 : index
    %c0_23 = arith.constant 0 : index
    %8 = vector.load %arg3[%c0_21, %c0_22, %c0_23] : memref<4x16x16xf32, #tpu.memory_space<vmem>>, vector<4x16x16xf32>
    %c0_24 = arith.constant 0 : index
    %c16_25 = arith.constant 16 : index
    %c16_26 = arith.constant 16 : index
    %9 = vector.load %arg4[%c0_24, %c16_25, %c16_26] : memref<4x48x48xf32, #tpu.memory_space<vmem>>, vector<4x16x16xf32>
    tpu.vector_store %arg4[%c0_24, %c16_25, %c16_26], %8 {strides = array<i32>} : memref<4x48x48xf32, #tpu.memory_space<vmem>>, vector<4x16x16xf32>,
    %c0_27 = arith.constant 0 : index
    %c0_28 = arith.constant 0 : index
    %c0_29 = arith.constant 0 : index
    %10 = vector.load %arg3[%c0_27, %c0_28, %c0_29] : memref<4x16x16xf32, #tpu.memory_space<vmem>>, vector<4x16x16xf32>
    %c0_30 = arith.constant 0 : index
    %c16_31 = arith.constant 16 : index
    %c32_32 = arith.constant 32 : index
    %11 = vector.load %arg4[%c0_30, %c16_31, %c32_32] : memref<4x48x48xf32, #tpu.memory_space<vmem>>, vector<4x16x16xf32>
    tpu.vector_store %arg4[%c0_30, %c16_31, %c32_32], %10 {strides = array<i32>} : memref<4x48x48xf32, #tpu.memory_space<vmem>>, vector<4x16x16xf32>,
    %c0_33 = arith.constant 0 : index
    %c0_34 = arith.constant 0 : index
    %c0_35 = arith.constant 0 : index
    %12 = vector.load %arg3[%c0_33, %c0_34, %c0_35] : memref<4x16x16xf32, #tpu.memory_space<vmem>>, vector<4x16x16xf32>
    %c0_36 = arith.constant 0 : index
    %c32_37 = arith.constant 32 : index
    %c0_38 = arith.constant 0 : index
    %13 = vector.load %arg4[%c0_36, %c32_37, %c0_38] : memref<4x48x48xf32, #tpu.memory_space<vmem>>, vector<4x16x16xf32>
    tpu.vector_store %arg4[%c0_36, %c32_37, %c0_38], %12 {strides = array<i32>} : memref<4x48x48xf32, #tpu.memory_space<vmem>>, vector<4x16x16xf32>,
    %c0_39 = arith.constant 0 : index
    %c0_40 = arith.constant 0 : index
    %c0_41 = arith.constant 0 : index
    %14 = vector.load %arg3[%c0_39, %c0_40, %c0_41] : memref<4x16x16xf32, #tpu.memory_space<vmem>>, vector<4x16x16xf32>
    %c0_42 = arith.constant 0 : index
    %c32_43 = arith.constant 32 : index
    %c16_44 = arith.constant 16 : index
    %15 = vector.load %arg4[%c0_42, %c32_43, %c16_44] : memref<4x48x48xf32, #tpu.memory_space<vmem>>, vector<4x16x16xf32>
    tpu.vector_store %arg4[%c0_42, %c32_43, %c16_44], %14 {strides = array<i32>} : memref<4x48x48xf32, #tpu.memory_space<vmem>>, vector<4x16x16xf32>,
    %c0_45 = arith.constant 0 : index
    %c0_46 = arith.constant 0 : index
    %c0_47 = arith.constant 0 : index
    %16 = vector.load %arg3[%c0_45, %c0_46, %c0_47] : memref<4x16x16xf32, #tpu.memory_space<vmem>>, vector<4x16x16xf32>
    %c0_48 = arith.constant 0 : index
    %c32_49 = arith.constant 32 : index
    %c32_50 = arith.constant 32 : index
    %17 = vector.load %arg4[%c0_48, %c32_49, %c32_50] : memref<4x48x48xf32, #tpu.memory_space<vmem>>, vector<4x16x16xf32>
    tpu.vector_store %arg4[%c0_48, %c32_49, %c32_50], %16 {strides = array<i32>} : memref<4x48x48xf32, #tpu.memory_space<vmem>>, vector<4x16x16xf32>,
    return
  }
  func.func @transform_0(%arg0: i32, %arg1: i32, %arg2: i32) -> (i32, i32, i32) {
    %c0_i32 = arith.constant 0 : i32
    %c0_i32_0 = arith.constant 0 : i32
    return %arg0, %arg1, %c0_i32 : i32, i32, i32
  }
  func.func @transform_1(%arg0: i32, %arg1: i32, %arg2: i32) -> (i32, i32, i32) {
    %c1_i32 = arith.constant 1 : i32
    %0 = arith.muli %arg2, %c1_i32 : i32
    %1 = arith.addi %0, %arg1 : i32
    %c0_i32 = arith.constant 0 : i32
    %c0_i32_0 = arith.constant 0 : i32
    return %arg0, %1, %c0_i32 : i32, i32, i32
  }
}

</mosaic_0001>

<llo_original>
// kernel: tpu_custom_call.1
$region0: #{tpu_custom_call.1}
  #allocation0 [shape = 'u32[]', space=smem, size = 0x4, offset = 0x4, fixed_abs, tag = 'smem constant byte address 0x4 - core index']
  #allocation1 [shape = 'u32[144,128]{1,0:T(1,128)}', space=vmem, size = 0x12000, scoped, tag = 'internal scratch']
  %s0 = inlined_call_operand.hbm [shape: f32[8,16,16], index: 0, kind: input, shape index: {}]
  %s1 = inlined_call_operand.hbm [shape: f32[8,48,48], index: 1, kind: output, shape index: {}]
  %s2 = sld [smem:[#allocation0]]
  $region41: #{tpu_custom_call.1} parent=0
    _
  %s4 = ssub.s32 1, %s2
  %s5 = scalar_select 0, %s4, %s2
  $region1: #{tpu_custom_call.1} parent=0
    #allocation2 [shape = 'u8[65536]{0}', space=vmem, size = 0x10000, scoped, tag = 'input window, operand 0']
    #allocation3 [shape = 's32[2]{0}', space=sflag, size = 0x8, scoped, tag = 'scoped memory for tpu_custom_call.1']
    #allocation4 [shape = 's32[2]{0}', space=sflag, size = 0x8, scoped, tag = 'scoped memory for tpu_custom_call.1']
    #allocation5 [shape = 'u8[196608]{0}', space=vmem, size = 0x30000, scoped, tag = 'output window, operand 0']
    %6 = vsyncpa [#allocation3], 0
    %s7 = scalar_lea.sflag [#allocation3], 1
    %8 = vsyncpa %s7, 0
    %9 = vsyncpa [#allocation4], 0
    %s10 = scalar_lea.sflag [#allocation4], 1
    %11 = vsyncpa %s10, 0
    loop: start=0, step=1, limit=4
    $region2: #{tpu_custom_call.1} parent=1 // loop_pre_header
      _
    $region3: #{tpu_custom_call.1} parent=1 // loop_header
      %s13 = sphi 0, %s17
      %p14 = scmp.ge.s32.totalorder %s13, 4
      %s20 = sphi 0, %s39
      %s21 = sphi 0, %s35
      %s22 = sphi 0, %s31
      %s23 = sphi 0, %s20
      %s24 = sphi 0, %s21
      %s25 = sphi 0, %s22
      %s26 = sphi 0, %s23
      %s27 = sphi 0, %s24
      %s28 = sphi 0, %s25
      %s44 = sphi 0, %s46
      %s47 = sphi 0, %s44
      %s48 = sphi 0, %s47
      %s64 = sphi 0, %s48
      %s74 = sphi 0, %s76
      %s77 = sphi 0, %s74
      %s78 = sphi 0, %s77
      %s94 = sphi 0, %s78
    $region4: #{tpu_custom_call.1} parent=1 // loop_header_branch
      %16 = sbr.rel (%p14) target = $region8
    $region5: #{tpu_custom_call.1} parent=1 // loop_body
      %s18 = ssub.s32 %s13, 1
      %s19 = ssub.s32 %s13, 2
      %s29 = sadd.s32 1, %s22
      %p30 = scmp.ge.s32.totalorder %s29, 1
      %s31 = scalar_select %p30, 0, %s29
      %s32 = sadd.s32 1, %s21
      %s33 = scalar_select %p30, %s32, %s21
      %p34 = scmp.ge.s32.totalorder %s33, 1
      %s35 = scalar_select %p34, 0, %s33
      %s36 = sadd.s32 1, %s20
      %s37 = scalar_select %p34, %s36, %s20
      %p38 = scmp.ge.s32.totalorder %s37, 2
      %s39 = scalar_select %p38, 0, %s37
      %s40 = ssub.s32 %s20, %s39
      %s41 = ssub.s32 %s21, %s35
      %s42 = sor.u32 %s40, %s41
      %p43 = scmp.eq.s32.totalorder %s42, 0
      %s45 = sadd.s32 %s44, 1
      %s46 = scalar_select %p43, %s44, %s45
      %p49 = pneg %p43
      %p50 = scmp.eq.s32.totalorder %s13, 1
      %p51 = por %p49, %p50
      %p52 = scmp.ne.s32.totalorder %s44, %s47
      %p53 = scmp.eq.s32.totalorder %s13, 0
      %p54 = por %p52, %p53
      %p55 = scmp.ne.s32.totalorder %s44, %s47
      %p56 = scmp.eq.s32.totalorder %s18, 1
      %p57 = por %p55, %p56
      %p58 = scmp.ne.s32.totalorder %s47, %s48
      %p59 = scmp.eq.s32.totalorder %s18, 0
      %p60 = por %p58, %p59
      %p61 = scmp.ne.s32.totalorder %s47, %s48
      %p62 = scmp.eq.s32.totalorder %s19, 1
      %p63 = por %p61, %p62
      %p65 = scmp.ne.s32.totalorder %s48, %s64
      %p66 = scmp.eq.s32.totalorder %s19, 0
      %p67 = por %p65, %p66
      %s68 = sadd.s32 %s22, %s21
      %s69 = sadd.s32 %s31, %s35
      %s70 = ssub.s32 %s20, %s39
      %s71 = ssub.s32 %s68, %s69
      %s72 = sor.u32 %s70, %s71
      %p73 = scmp.eq.s32.totalorder %s72, 0
      %s75 = sadd.s32 %s74, 1
      %s76 = scalar_select %p73, %s74, %s75
      %p79 = pneg %p73
      %p80 = scmp.eq.s32.totalorder %s13, 1
      %p81 = por %p79, %p80
      %p82 = scmp.ne.s32.totalorder %s74, %s77
      %p83 = scmp.eq.s32.totalorder %s13, 0
      %p84 = por %p82, %p83
      %p85 = scmp.ne.s32.totalorder %s74, %s77
      %p86 = scmp.eq.s32.totalorder %s18, 1
      %p87 = por %p85, %p86
      %p88 = scmp.ne.s32.totalorder %s77, %s78
      %p89 = scmp.eq.s32.totalorder %s18, 0
      %p90 = por %p88, %p89
      %p91 = scmp.ne.s32.totalorder %s77, %s78
      %p92 = scmp.eq.s32.totalorder %s19, 1
      %p93 = por %p91, %p92
      %p95 = scmp.ne.s32.totalorder %s78, %s94
      %p96 = scmp.eq.s32.totalorder %s19, 0
      %p97 = por %p95, %p96
      %p98 = scmp.le.s32.totalorder 1, %s13
      %p99 = scmp.lt.s32.totalorder %s13, 3
      %p100 = pnand %p98, %p99
      %p101 = pneg %p100
      // Predicated region
      $region9: #{tpu_custom_call.1} parent=5 // pred_check
        _
      $region10: #{tpu_custom_call.1} parent=5 // pred_check_branch
        %103 = sbr.rel (%p100) target = $region12
      $region11: #{tpu_custom_call.1} parent=5 // pred_region
        %s104 = ssub.s32 %s13, 1
      $region12: #{tpu_custom_call.1} parent=5 // pred_fallthru
        _
      %p105 = scmp.lt.s32.totalorder %s13, 2
      // Predicated region
      $region13: #{tpu_custom_call.1} parent=5 // pred_check
        %p106 = pneg %p105
      $region14: #{tpu_custom_call.1} parent=5 // pred_check_branch
        %108 = sbr.rel (%p106) target = $region16
      $region15: #{tpu_custom_call.1} parent=5 // pred_region
        // Predicated region
        $region17: #{tpu_custom_call.1} parent=15 // pred_check
          %p109 = pneg %p54
        $region18: #{tpu_custom_call.1} parent=15 // pred_check_branch
          %111 = sbr.rel (%p109) target = $region20
        $region19: #{tpu_custom_call.1} parent=15 // pred_region
          %s112 = sand.u32 %s44, 1
          %s113 = scalar_lea.sflag [#allocation3], %s112
          %s114 = sand.u32 %s44, 1
          %s115 = smul.addr %s114, 64
          %s116 = scalar_lea.vmem [#allocation2], %s115
          %s117 = smul.u32 4, %s20
          %s118 = smul.u32 2, %s21
          %s120 = ssub.s32 1024, 1024
          %121 = vsyncadd %s113, %s120
          %s122 = smul.addr %s117, 2
          %s123 = sadd.s32 %s118, %s122
          %s124 = smul.addr %s123, 128
          %s125 = scalar_lea.hbm %s0, %s124
          %s126 = sshll.u32 %s116, 4
          %s127 = int_to_ptr.vmem [resolvable:$true] %s126
          %132 = dma.hbm_to_vmem [thread:$0]  %s125, 1024, %s127, %s113, 128, 128, 8
        $region20: #{tpu_custom_call.1} parent=15 // pred_fallthru
          _
      $region16: #{tpu_custom_call.1} parent=5 // pred_fallthru
        _
      %p133 = scmp.le.s32.totalorder 1, %s13
      %p134 = scmp.lt.s32.totalorder %s13, 3
      %p135 = pnand %p133, %p134
      %p136 = pneg %p135
      // Predicated region
      $region21: #{tpu_custom_call.1} parent=5 // pred_check
        _
      $region22: #{tpu_custom_call.1} parent=5 // pred_check_branch
        %138 = sbr.rel (%p135) target = $region24
      $region23: #{tpu_custom_call.1} parent=5 // pred_region
        %s139 = ssub.s32 %s13, 1
        %s140 = sand.u32 %s47, 1
        %s141 = scalar_lea.sflag [#allocation3], %s140
        %s142 = sand.u32 %s47, 1
        %s143 = smul.addr %s142, 64
        %s144 = scalar_lea.vmem [#allocation2], %s143
        // Predicated region
        $region25: #{tpu_custom_call.1} parent=23 // pred_check
          %p145 = pneg %p60
        $region26: #{tpu_custom_call.1} parent=23 // pred_check_branch
          %147 = sbr.rel (%p145) target = $region28
        $region27: #{tpu_custom_call.1} parent=23 // pred_region
          %148 = dma.done %s141, 1024
        $region28: #{tpu_custom_call.1} parent=23 // pred_fallthru
          _
        %s149 = sand.u32 %s47, 1
        %s150 = scalar_lea.sflag [#allocation3], %s149
        %s151 = sand.u32 %s47, 1
        %s152 = smul.addr %s151, 64
        %s153 = scalar_lea.vmem [#allocation2], %s152
        %p154 = pneg %p60
        %p155 = pneg %p57
        %p156 = pneg %p90
        %p157 = pneg %p87
        %s158 = sand.u32 %s77, 1
        %s159 = scalar_lea.sflag [#allocation4], %s158
        %s160 = sand.u32 %s77, 1
        %s161 = smul.addr %s160, 192
        %s162 = scalar_lea.vmem [#allocation5], %s161
        %s163 = smul.u32 4, %s23
        %s164 = smul.u32 2, %s24
        %s165 = sadd.s32 %s25, %s24
        %s166 = smul.u32 4, %s23
        %s167 = smul.u32 6, %s165
        %v168 = vld [vmem:[%s144] sm:$0xff]
        %v169 = vld [vmem:[%s144 + $0x8] sm:$0xff]
        %v170 = vld [vmem:[%s144 + $0x10] sm:$0xff]
        %v171 = vld [vmem:[%s144 + $0x18] sm:$0xff]
        %v172 = vld [vmem:[%s144 + $0x20] sm:$0xff]
        %v173 = vld [vmem:[%s144 + $0x28] sm:$0xff]
        %v174 = vld [vmem:[%s144 + $0x30] sm:$0xff]
        %v175 = vld [vmem:[%s144 + $0x38] sm:$0xff]
        %vm176 = vcmask 130048
        %177 = vst.msk [vmem:[%s162] sm:$0xff] %vm176, %v168
        %178 = vst.msk [vmem:[%s162 + $0x8] sm:$0xff] %vm176, %v169
        %179 = vst.msk [vmem:[%s162 + $0x30] sm:$0xff] %vm176, %v170
        %180 = vst.msk [vmem:[%s162 + $0x38] sm:$0xff] %vm176, %v171
        %181 = vst.msk [vmem:[%s162 + $0x60] sm:$0xff] %vm176, %v172
        %182 = vst.msk [vmem:[%s162 + $0x68] sm:$0xff] %vm176, %v173
        %183 = vst.msk [vmem:[%s162 + $0x90] sm:$0xff] %vm176, %v174
        %184 = vst.msk [vmem:[%s162 + $0x98] sm:$0xff] %vm176, %v175
        %v185 = vld [vmem:[%s144] sm:$0xff]
        %v186 = vld [vmem:[%s144 + $0x8] sm:$0xff]
        %v187 = vld [vmem:[%s144 + $0x10] sm:$0xff]
        %v188 = vld [vmem:[%s144 + $0x18] sm:$0xff]
        %v189 = vld [vmem:[%s144 + $0x20] sm:$0xff]
        %v190 = vld [vmem:[%s144 + $0x28] sm:$0xff]
        %v191 = vld [vmem:[%s144 + $0x30] sm:$0xff]
        %v192 = vld [vmem:[%s144 + $0x38] sm:$0xff]
        %201 = vrot.lane.b32.xlu0 %v185, 16
        %v202 = vpop.permute.xlu0 %201
        %203 = vrot.lane.b32.xlu0 %v186, 16
        %v204 = vpop.permute.xlu0 %203
        %205 = vrot.lane.b32.xlu0 %v187, 16
        %v206 = vpop.permute.xlu0 %205
        %207 = vrot.lane.b32.xlu0 %v188, 16
        %v208 = vpop.permute.xlu0 %207
        %209 = vrot.lane.b32.xlu0 %v189, 16
        %v210 = vpop.permute.xlu0 %209
        %211 = vrot.lane.b32.xlu0 %v190, 16
        %v212 = vpop.permute.xlu0 %211
        %213 = vrot.lane.b32.xlu0 %v191, 16
        %v214 = vpop.permute.xlu0 %213
        %215 = vrot.lane.b32.xlu0 %v192, 16
        %v216 = vpop.permute.xlu0 %215
        %vm225 = vcmask 261248
        %226 = vst.msk [vmem:[%s162] sm:$0xff] %vm225, %v202
        %227 = vst.msk [vmem:[%s162 + $0x8] sm:$0xff] %vm225, %v204
        %228 = vst.msk [vmem:[%s162 + $0x30] sm:$0xff] %vm225, %v206
        %229 = vst.msk [vmem:[%s162 + $0x38] sm:$0xff] %vm225, %v208
        %230 = vst.msk [vmem:[%s162 + $0x60] sm:$0xff] %vm225, %v210
        %231 = vst.msk [vmem:[%s162 + $0x68] sm:$0xff] %vm225, %v212
        %232 = vst.msk [vmem:[%s162 + $0x90] sm:$0xff] %vm225, %v214
        %233 = vst.msk [vmem:[%s162 + $0x98] sm:$0xff] %vm225, %v216
        %v234 = vld [vmem:[%s144] sm:$0xff]
        %v235 = vld [vmem:[%s144 + $0x8] sm:$0xff]
        %v236 = vld [vmem:[%s144 + $0x10] sm:$0xff]
        %v237 = vld [vmem:[%s144 + $0x18] sm:$0xff]
        %v238 = vld [vmem:[%s144 + $0x20] sm:$0xff]
        %v239 = vld [vmem:[%s144 + $0x28] sm:$0xff]
        %v240 = vld [vmem:[%s144 + $0x30] sm:$0xff]
        %v241 = vld [vmem:[%s144 + $0x38] sm:$0xff]
        %250 = vrot.lane.b32.xlu0 %v234, 32
        %v251 = vpop.permute.xlu0 %250
        %252 = vrot.lane.b32.xlu0 %v235, 32
        %v253 = vpop.permute.xlu0 %252
        %254 = vrot.lane.b32.xlu0 %v236, 32
        %v255 = vpop.permute.xlu0 %254
        %256 = vrot.lane.b32.xlu0 %v237, 32
        %v257 = vpop.permute.xlu0 %256
        %258 = vrot.lane.b32.xlu0 %v238, 32
        %v259 = vpop.permute.xlu0 %258
        %260 = vrot.lane.b32.xlu0 %v239, 32
        %v261 = vpop.permute.xlu0 %260
        %262 = vrot.lane.b32.xlu0 %v240, 32
        %v263 = vpop.permute.xlu0 %262
        %264 = vrot.lane.b32.xlu0 %v241, 32
        %v265 = vpop.permute.xlu0 %264
        %vm274 = vcmask 392448
        %275 = vst.msk [vmem:[%s162] sm:$0xff] %vm274, %v251
        %276 = vst.msk [vmem:[%s162 + $0x8] sm:$0xff] %vm274, %v253
        %277 = vst.msk [vmem:[%s162 + $0x30] sm:$0xff] %vm274, %v255
        %278 = vst.msk [vmem:[%s162 + $0x38] sm:$0xff] %vm274, %v257
        %279 = vst.msk [vmem:[%s162 + $0x60] sm:$0xff] %vm274, %v259
        %280 = vst.msk [vmem:[%s162 + $0x68] sm:$0xff] %vm274, %v261
        %281 = vst.msk [vmem:[%s162 + $0x90] sm:$0xff] %vm274, %v263
        %282 = vst.msk [vmem:[%s162 + $0x98] sm:$0xff] %vm274, %v265
        %v283 = vld [vmem:[%s144] sm:$0xff]
        %v284 = vld [vmem:[%s144 + $0x8] sm:$0xff]
        %v285 = vld [vmem:[%s144 + $0x10] sm:$0xff]
        %v286 = vld [vmem:[%s144 + $0x18] sm:$0xff]
        %v287 = vld [vmem:[%s144 + $0x20] sm:$0xff]
        %v288 = vld [vmem:[%s144 + $0x28] sm:$0xff]
        %v289 = vld [vmem:[%s144 + $0x30] sm:$0xff]
        %v290 = vld [vmem:[%s144 + $0x38] sm:$0xff]
        %291 = vst.msk [vmem:[%s162 + $0x10] sm:$0xff] %vm176, %v283
        %292 = vst.msk [vmem:[%s162 + $0x18] sm:$0xff] %vm176, %v284
        %293 = vst.msk [vmem:[%s162 + $0x40] sm:$0xff] %vm176, %v285
        %294 = vst.msk [vmem:[%s162 + $0x48] sm:$0xff] %vm176, %v286
        %295 = vst.msk [vmem:[%s162 + $0x70] sm:$0xff] %vm176, %v287
        %296 = vst.msk [vmem:[%s162 + $0x78] sm:$0xff] %vm176, %v288
        %297 = vst.msk [vmem:[%s162 + $0xa0] sm:$0xff] %vm176, %v289
        %298 = vst.msk [vmem:[%s162 + $0xa8] sm:$0xff] %vm176, %v290
        %v299 = vld [vmem:[%s144] sm:$0xff]
        %v300 = vld [vmem:[%s144 + $0x8] sm:$0xff]
        %v301 = vld [vmem:[%s144 + $0x10] sm:$0xff]
        %v302 = vld [vmem:[%s144 + $0x18] sm:$0xff]
        %v303 = vld [vmem:[%s144 + $0x20] sm:$0xff]
        %v304 = vld [vmem:[%s144 + $0x28] sm:$0xff]
        %v305 = vld [vmem:[%s144 + $0x30] sm:$0xff]
        %v306 = vld [vmem:[%s144 + $0x38] sm:$0xff]
        %315 = vrot.lane.b32.xlu0 %v299, 16
        %v316 = vpop.permute.xlu0 %315
        %317 = vrot.lane.b32.xlu0 %v300, 16
        %v318 = vpop.permute.xlu0 %317
        %319 = vrot.lane.b32.xlu0 %v301, 16
        %v320 = vpop.permute.xlu0 %319
        %321 = vrot.lane.b32.xlu0 %v302, 16
        %v322 = vpop.permute.xlu0 %321
        %323 = vrot.lane.b32.xlu0 %v303, 16
        %v324 = vpop.permute.xlu0 %323
        %325 = vrot.lane.b32.xlu0 %v304, 16
        %v326 = vpop.permute.xlu0 %325
        %327 = vrot.lane.b32.xlu0 %v305, 16
        %v328 = vpop.permute.xlu0 %327
        %329 = vrot.lane.b32.xlu0 %v306, 16
        %v330 = vpop.permute.xlu0 %329
        %339 = vst.msk [vmem:[%s162 + $0x10] sm:$0xff] %vm225, %v316
        %340 = vst.msk [vmem:[%s162 + $0x18] sm:$0xff] %vm225, %v318
        %341 = vst.msk [vmem:[%s162 + $0x40] sm:$0xff] %vm225, %v320
        %342 = vst.msk [vmem:[%s162 + $0x48] sm:$0xff] %vm225, %v322
        %343 = vst.msk [vmem:[%s162 + $0x70] sm:$0xff] %vm225, %v324
        %344 = vst.msk [vmem:[%s162 + $0x78] sm:$0xff] %vm225, %v326
        %345 = vst.msk [vmem:[%s162 + $0xa0] sm:$0xff] %vm225, %v328
        %346 = vst.msk [vmem:[%s162 + $0xa8] sm:$0xff] %vm225, %v330
        %v347 = vld [vmem:[%s144] sm:$0xff]
        %v348 = vld [vmem:[%s144 + $0x8] sm:$0xff]
        %v349 = vld [vmem:[%s144 + $0x10] sm:$0xff]
        %v350 = vld [vmem:[%s144 + $0x18] sm:$0xff]
        %v351 = vld [vmem:[%s144 + $0x20] sm:$0xff]
        %v352 = vld [vmem:[%s144 + $0x28] sm:$0xff]
        %v353 = vld [vmem:[%s144 + $0x30] sm:$0xff]
        %v354 = vld [vmem:[%s144 + $0x38] sm:$0xff]
        %363 = vrot.lane.b32.xlu0 %v347, 32
        %v364 = vpop.permute.xlu0 %363
        %365 = vrot.lane.b32.xlu0 %v348, 32
        %v366 = vpop.permute.xlu0 %365
        %367 = vrot.lane.b32.xlu0 %v349, 32
        %v368 = vpop.permute.xlu0 %367
        %369 = vrot.lane.b32.xlu0 %v350, 32
        %v370 = vpop.permute.xlu0 %369
        %371 = vrot.lane.b32.xlu0 %v351, 32
        %v372 = vpop.permute.xlu0 %371
        %373 = vrot.lane.b32.xlu0 %v352, 32
        %v374 = vpop.permute.xlu0 %373
        %375 = vrot.lane.b32.xlu0 %v353, 32
        %v376 = vpop.permute.xlu0 %375
        %377 = vrot.lane.b32.xlu0 %v354, 32
        %v378 = vpop.permute.xlu0 %377
        %387 = vst.msk [vmem:[%s162 + $0x10] sm:$0xff] %vm274, %v364
        %388 = vst.msk [vmem:[%s162 + $0x18] sm:$0xff] %vm274, %v366
        %389 = vst.msk [vmem:[%s162 + $0x40] sm:$0xff] %vm274, %v368
        %390 = vst.msk [vmem:[%s162 + $0x48] sm:$0xff] %vm274, %v370
        %391 = vst.msk [vmem:[%s162 + $0x70] sm:$0xff] %vm274, %v372
        %392 = vst.msk [vmem:[%s162 + $0x78] sm:$0xff] %vm274, %v374
        %393 = vst.msk [vmem:[%s162 + $0xa0] sm:$0xff] %vm274, %v376
        %394 = vst.msk [vmem:[%s162 + $0xa8] sm:$0xff] %vm274, %v378
        %v395 = vld [vmem:[%s144] sm:$0xff]
        %v396 = vld [vmem:[%s144 + $0x8] sm:$0xff]
        %v397 = vld [vmem:[%s144 + $0x10] sm:$0xff]
        %v398 = vld [vmem:[%s144 + $0x18] sm:$0xff]
        %v399 = vld [vmem:[%s144 + $0x20] sm:$0xff]
        %v400 = vld [vmem:[%s144 + $0x28] sm:$0xff]
        %v401 = vld [vmem:[%s144 + $0x30] sm:$0xff]
        %v402 = vld [vmem:[%s144 + $0x38] sm:$0xff]
        %403 = vst.msk [vmem:[%s162 + $0x20] sm:$0xff] %vm176, %v395
        %404 = vst.msk [vmem:[%s162 + $0x28] sm:$0xff] %vm176, %v396
        %405 = vst.msk [vmem:[%s162 + $0x50] sm:$0xff] %vm176, %v397
        %406 = vst.msk [vmem:[%s162 + $0x58] sm:$0xff] %vm176, %v398
        %407 = vst.msk [vmem:[%s162 + $0x80] sm:$0xff] %vm176, %v399
        %408 = vst.msk [vmem:[%s162 + $0x88] sm:$0xff] %vm176, %v400
        %409 = vst.msk [vmem:[%s162 + $0xb0] sm:$0xff] %vm176, %v401
        %410 = vst.msk [vmem:[%s162 + $0xb8] sm:$0xff] %vm176, %v402
        %v411 = vld [vmem:[%s144] sm:$0xff]
        %v412 = vld [vmem:[%s144 + $0x8] sm:$0xff]
        %v413 = vld [vmem:[%s144 + $0x10] sm:$0xff]
        %v414 = vld [vmem:[%s144 + $0x18] sm:$0xff]
        %v415 = vld [vmem:[%s144 + $0x20] sm:$0xff]
        %v416 = vld [vmem:[%s144 + $0x28] sm:$0xff]
        %v417 = vld [vmem:[%s144 + $0x30] sm:$0xff]
        %v418 = vld [vmem:[%s144 + $0x38] sm:$0xff]
        %427 = vrot.lane.b32.xlu0 %v411, 16
        %v428 = vpop.permute.xlu0 %427
        %429 = vrot.lane.b32.xlu0 %v412, 16
        %v430 = vpop.permute.xlu0 %429
        %431 = vrot.lane.b32.xlu0 %v413, 16
        %v432 = vpop.permute.xlu0 %431
        %433 = vrot.lane.b32.xlu0 %v414, 16
        %v434 = vpop.permute.xlu0 %433
        %435 = vrot.lane.b32.xlu0 %v415, 16
        %v436 = vpop.permute.xlu0 %435
        %437 = vrot.lane.b32.xlu0 %v416, 16
        %v438 = vpop.permute.xlu0 %437
        %439 = vrot.lane.b32.xlu0 %v417, 16
        %v440 = vpop.permute.xlu0 %439
        %441 = vrot.lane.b32.xlu0 %v418, 16
        %v442 = vpop.permute.xlu0 %441
        %451 = vst.msk [vmem:[%s162 + $0x20] sm:$0xff] %vm225, %v428
        %452 = vst.msk [vmem:[%s162 + $0x28] sm:$0xff] %vm225, %v430
        %453 = vst.msk [vmem:[%s162 + $0x50] sm:$0xff] %vm225, %v432
        %454 = vst.msk [vmem:[%s162 + $0x58] sm:$0xff] %vm225, %v434
        %455 = vst.msk [vmem:[%s162 + $0x80] sm:$0xff] %vm225, %v436
        %456 = vst.msk [vmem:[%s162 + $0x88] sm:$0xff] %vm225, %v438
        %457 = vst.msk [vmem:[%s162 + $0xb0] sm:$0xff] %vm225, %v440
        %458 = vst.msk [vmem:[%s162 + $0xb8] sm:$0xff] %vm225, %v442
        %v459 = vld [vmem:[%s144] sm:$0xff]
        %v460 = vld [vmem:[%s144 + $0x8] sm:$0xff]
        %v461 = vld [vmem:[%s144 + $0x10] sm:$0xff]
        %v462 = vld [vmem:[%s144 + $0x18] sm:$0xff]
        %v463 = vld [vmem:[%s144 + $0x20] sm:$0xff]
        %v464 = vld [vmem:[%s144 + $0x28] sm:$0xff]
        %v465 = vld [vmem:[%s144 + $0x30] sm:$0xff]
        %v466 = vld [vmem:[%s144 + $0x38] sm:$0xff]
        %475 = vrot.lane.b32.xlu0 %v459, 32
        %v476 = vpop.permute.xlu0 %475
        %477 = vrot.lane.b32.xlu0 %v460, 32
        %v478 = vpop.permute.xlu0 %477
        %479 = vrot.lane.b32.xlu0 %v461, 32
        %v480 = vpop.permute.xlu0 %479
        %481 = vrot.lane.b32.xlu0 %v462, 32
        %v482 = vpop.permute.xlu0 %481
        %483 = vrot.lane.b32.xlu0 %v463, 32
        %v484 = vpop.permute.xlu0 %483
        %485 = vrot.lane.b32.xlu0 %v464, 32
        %v486 = vpop.permute.xlu0 %485
        %487 = vrot.lane.b32.xlu0 %v465, 32
        %v488 = vpop.permute.xlu0 %487
        %489 = vrot.lane.b32.xlu0 %v466, 32
        %v490 = vpop.permute.xlu0 %489
        %499 = vst.msk [vmem:[%s162 + $0x20] sm:$0xff] %vm274, %v476
        %500 = vst.msk [vmem:[%s162 + $0x28] sm:$0xff] %vm274, %v478
        %501 = vst.msk [vmem:[%s162 + $0x50] sm:$0xff] %vm274, %v480
        %502 = vst.msk [vmem:[%s162 + $0x58] sm:$0xff] %vm274, %v482
        %503 = vst.msk [vmem:[%s162 + $0x80] sm:$0xff] %vm274, %v484
        %504 = vst.msk [vmem:[%s162 + $0x88] sm:$0xff] %vm274, %v486
        %505 = vst.msk [vmem:[%s162 + $0xb0] sm:$0xff] %vm274, %v488
        %506 = vst.msk [vmem:[%s162 + $0xb8] sm:$0xff] %vm274, %v490
        %s507 = sand.u32 %s77, 1
        %s508 = scalar_lea.sflag [#allocation4], %s507
        %s509 = sand.u32 %s77, 1
        %s510 = smul.addr %s509, 192
        %s511 = scalar_lea.vmem [#allocation5], %s510
        // Predicated region
        $region29: #{tpu_custom_call.1} parent=23 // pred_check
          %p512 = pneg %p87
        $region30: #{tpu_custom_call.1} parent=23 // pred_check_branch
          %514 = sbr.rel (%p512) target = $region32
        $region31: #{tpu_custom_call.1} parent=23 // pred_region
          %s515 = sadd.s32 %s25, %s24
          %s516 = smul.u32 4, %s23
          %s517 = smul.u32 6, %s515
          %s519 = ssub.s32 3072, 3072
          %520 = vsyncadd %s508, %s519
          %s521 = smul.addr %s516, 6
          %s522 = sadd.s32 %s517, %s521
          %s523 = smul.addr %s522, 128
          %s524 = scalar_lea.hbm %s1, %s523
          %s525 = sshll.u32 %s511, 4
          %s526 = int_to_ptr.vmem [resolvable:$true] %s525
          %531 = dma.vmem_to_hbm [thread:$0]  %s526, 3072, %s524, %s508, 128, 128, 8
        $region32: #{tpu_custom_call.1} parent=23 // pred_fallthru
          _
      $region24: #{tpu_custom_call.1} parent=5 // pred_fallthru
        _
      %p532 = scmp.le.s32.totalorder 2, %s13
      // Predicated region
      $region33: #{tpu_custom_call.1} parent=5 // pred_check
        %p533 = pneg %p532
      $region34: #{tpu_custom_call.1} parent=5 // pred_check_branch
        %535 = sbr.rel (%p533) target = $region36
      $region35: #{tpu_custom_call.1} parent=5 // pred_region
        %s536 = ssub.s32 %s13, 2
        // Predicated region
        $region37: #{tpu_custom_call.1} parent=35 // pred_check
          %p537 = pneg %p93
        $region38: #{tpu_custom_call.1} parent=35 // pred_check_branch
          %539 = sbr.rel (%p537) target = $region40
        $region39: #{tpu_custom_call.1} parent=35 // pred_region
          %s540 = sand.u32 %s78, 1
          %s541 = scalar_lea.sflag [#allocation4], %s540
          %s542 = sand.u32 %s78, 1
          %s543 = smul.addr %s542, 192
          %s544 = scalar_lea.vmem [#allocation5], %s543
          %545 = dma.done %s541, 3072
        $region40: #{tpu_custom_call.1} parent=35 // pred_fallthru
          _
      $region36: #{tpu_custom_call.1} parent=5 // pred_fallthru
        _
    $region6: #{tpu_custom_call.1} parent=1 // loop_footer
      %s17 = sadd.s32 1, %s13
    $region7: #{tpu_custom_call.1} parent=1 // loop_footer_branch
      %12 = sbr.rel target = $region3
    $region8: #{tpu_custom_call.1} parent=1 // loop_exit
      _
    %546 = vsyncpa [#allocation3], 1
    %s547 = scalar_lea.sflag [#allocation3], 1
    %548 = vsyncpa %s547, 1
    %549 = vsyncpa [#allocation4], 1
    %s550 = scalar_lea.sflag [#allocation4], 1
    %551 = vsyncpa %s550, 1

</llo_original>
